<compile_context>
chip_gen: v7x
topology: tpu7x:2x2x1
jax: 0.10.0
libtpu: 0.0.40
codegen_flags: <defaults>
</compile_context>

<pallas_src>
import jax
import jax.numpy as jnp
from jax.experimental import pallas as pl
from jax.experimental.pallas import tpu as pltpu


def _pick_tile(dim, target, multiple):
    """Largest divisor of `dim` that is <= target and a multiple of `multiple`;
    falls back to `dim` itself (a full-extent block always satisfies the (8,128)
    layout rule)."""
    if dim <= target:
        return dim
    t = (target // multiple) * multiple
    while t >= multiple:
        if dim % t == 0:
            return t
        t -= multiple
    return dim


# ----------------------------- kernels ---------------------------------------


def _conv_stats_kernel(x_ref, w_ref, b_ref, s1_ref, s2_ref):
    """Pass 1: y = W @ x + b on one tile; accumulate per-channel sum / sum-sq."""

    @pl.when((pl.program_id(1) == 0) & (pl.program_id(2) == 0))
    def _():
        s1_ref[...] = jnp.zeros_like(s1_ref)
        s2_ref[...] = jnp.zeros_like(s2_ref)

    x = x_ref[0].astype(jnp.float32)                        # (Cin, thw)
    w = w_ref[...].astype(jnp.float32)                      # (tco, Cin)
    y = jnp.dot(w, x, preferred_element_type=jnp.float32)   # (tco, thw) on MXU
    y = y + b_ref[...]                                      # (tco, 1) bcast over lanes
    s1_ref[...] += jnp.sum(y, axis=1, keepdims=True)        # XLU lane reduce
    s2_ref[...] += jnp.sum(y * y, axis=1, keepdims=True)


def _conv_affine_relu_kernel(x_ref, w_ref, b_ref, scale_ref, shift_ref, o_ref):
    """Pass 2: o = relu((W @ x + b) * scale + shift) on one tile."""
    x = x_ref[0].astype(jnp.float32)                        # (Cin, thw)
    w = w_ref[...].astype(jnp.float32)                      # (tco, Cin)
    y = jnp.dot(w, x, preferred_element_type=jnp.float32)   # (tco, thw)
    y = y + b_ref[...]
    z = y * scale_ref[...] + shift_ref[...]
    o_ref[0] = jnp.maximum(z, 0.0).astype(o_ref.dtype)


# --------------------------- pallas_call wrappers -----------------------------


def _conv_channel_stats(x3, w, b_col, *, tco, thw, vmem_limit):
    n, cin, hw = x3.shape
    cout = w.shape[0]
    grid = (cout // tco, n, hw // thw)
    return pl.pallas_call(
        _conv_stats_kernel,
        out_shape=(
            jax.ShapeDtypeStruct((cout, 1), jnp.float32),
            jax.ShapeDtypeStruct((cout, 1), jnp.float32),
        ),
        grid_spec=pltpu.PrefetchScalarGridSpec(
            num_scalar_prefetch=0,
            grid=grid,
            in_specs=[
                pl.BlockSpec((1, cin, thw), lambda co, ni, li: (ni, 0, li)),
                pl.BlockSpec((tco, cin), lambda co, ni, li: (co, 0)),
                pl.BlockSpec((tco, 1), lambda co, ni, li: (co, 0)),
            ],
            out_specs=[
                pl.BlockSpec((tco, 1), lambda co, ni, li: (co, 0)),
                pl.BlockSpec((tco, 1), lambda co, ni, li: (co, 0)),
            ],
        ),
        compiler_params=pltpu.CompilerParams(
            dimension_semantics=("parallel", "arbitrary", "arbitrary"),
            vmem_limit_bytes=vmem_limit,
        ),
    )(x3, w, b_col)


def _conv_affine_relu(x3, w, b_col, scale, shift, *, tco, thw, vmem_limit, out_dtype):
    n, cin, hw = x3.shape
    cout = w.shape[0]
    grid = (cout // tco, n, hw // thw)
    return pl.pallas_call(
        _conv_affine_relu_kernel,
        out_shape=jax.ShapeDtypeStruct((n, cout, hw), out_dtype),
        grid_spec=pltpu.PrefetchScalarGridSpec(
            num_scalar_prefetch=0,
            grid=grid,
            in_specs=[
                pl.BlockSpec((1, cin, thw), lambda co, ni, li: (ni, 0, li)),
                pl.BlockSpec((tco, cin), lambda co, ni, li: (co, 0)),
                pl.BlockSpec((tco, 1), lambda co, ni, li: (co, 0)),
                pl.BlockSpec((tco, 1), lambda co, ni, li: (co, 0)),
                pl.BlockSpec((tco, 1), lambda co, ni, li: (co, 0)),
            ],
            out_specs=pl.BlockSpec((1, tco, thw), lambda co, ni, li: (ni, co, li)),
        ),
        compiler_params=pltpu.CompilerParams(
            dimension_semantics=("parallel", "parallel", "parallel"),
            vmem_limit_bytes=vmem_limit,
        ),
    )(x3, w, b_col, scale, shift)


# ------------------------------ host-side math --------------------------------


def _norm_affine(s1, s2, count, *, bn, cn, eps_bn, eps_cn, gamma, beta):
    """Per-channel (scale, shift) implementing normalize(): BatchNorm (batch
    statistics, affine gamma/beta) followed by ContextNorm (batch statistics,
    affine=False).  Composed analytically -- no extra HBM pass."""
    mean = s1 / count
    var = jnp.maximum(s2 / count - mean * mean, 0.0)   # biased variance
    a = jnp.ones_like(mean)
    c = jnp.zeros_like(mean)
    m, v = mean, var
    steps = []
    if bn:
        steps.append((gamma, beta, eps_bn))
    if cn:
        steps.append((jnp.ones_like(mean), jnp.zeros_like(mean), eps_cn))
    for g, b_, e in steps:
        a_s = g * jax.lax.rsqrt(v + e)
        c = c * a_s + (b_ - m * a_s)
        a = a * a_s
        v = v * a_s * a_s
        m = b_
    return a, c


def conv1d_forward(x, weight, bias=None, *, cn=False, bn=True, activation="post",
                   eps_bn=1e-3, eps_cn=1e-3, gamma=None, beta=None):
    """Forward pass of Conv1d: (optional pre-norm) -> 1x1 conv -> (optional
    post-norm) -> ReLU.  x is NCHW (as consumed by the nn.Conv2d inside the
    module); weight is (Cout, Cin) or (Cout, Cin, 1, 1); bias is (Cout,)."""
    assert activation in ("pre", "post")
    n, cin, h, w_sp = x.shape
    hw = h * w_sp

    weight = jnp.asarray(weight)
    if weight.ndim == 4:
        # TODO(synk): spatial kernel_size > 1 not implemented; the module is used
        # as a pointwise (1x1) conv over B x C x N x 1 inputs.
        assert weight.shape[2] == 1 and weight.shape[3] == 1
        weight = weight[:, :, 0, 0]
    cout = weight.shape[0]

    if bias is None:
        bias = jnp.zeros((cout,), jnp.float32)
    if gamma is None:
        gamma = jnp.ones((cout,), jnp.float32)   # fresh BatchNorm2d init
    if beta is None:
        beta = jnp.zeros((cout,), jnp.float32)

    x3 = x.reshape(n, cin, hw)                               # free view of NCHW
    b_col = jnp.asarray(bias).reshape(cout, 1).astype(jnp.float32)
    gamma_c = jnp.asarray(gamma).reshape(cout, 1).astype(jnp.float32)
    beta_c = jnp.asarray(beta).reshape(cout, 1).astype(jnp.float32)

    # ---- tile sizes: H*W on lanes, channel tiles on sublanes -----------------
    tco = _pick_tile(cout, 256, 8)
    lane_budget = (2 * 1024 * 1024) // (4 * max(cin, tco))   # ~2 MiB per big tile
    thw = _pick_tile(hw, max(128, min(4096, lane_budget)), 128)
    vmem_limit = 32 * 1024 * 1024                            # explicit, fits v5e/v6e/v7x

    normalize = bn or cn
    count = float(n * hw)

    w_eff = weight
    b_eff = b_col
    scale = jnp.ones((cout, 1), jnp.float32)
    shift = jnp.zeros((cout, 1), jnp.float32)

    if normalize and activation == "pre":
        # Original module's 'pre' path only type-checks when Cin == Cout.
        assert cin == cout, "'pre' activation requires in_channels == out_channels"
        # Statistics of the *input*: reuse the conv+stats kernel with W=I, b=0.
        eye = jnp.eye(cin, dtype=jnp.float32)
        s1, s2 = _conv_channel_stats(x3, eye, jnp.zeros((cin, 1), jnp.float32),
                                     tco=tco, thw=thw, vmem_limit=vmem_limit)
        a_in, c_in = _norm_affine(s1, s2, count, bn=bn, cn=cn, eps_bn=eps_bn,
                                  eps_cn=eps_cn, gamma=gamma_c, beta=beta_c)
        # conv(x * a + c) = (W * a^T) @ x + (b + W @ c): fold pre-norm into W, b.
        w_f32 = weight.astype(jnp.float32)
        w_eff = w_f32 * a_in.reshape(1, cin)
        b_eff = b_col + w_f32 @ c_in
    elif normalize and activation == "post":
        s1, s2 = _conv_channel_stats(x3, weight, b_col,
                                     tco=tco, thw=thw, vmem_limit=vmem_limit)
        scale, shift = _norm_affine(s1, s2, count, bn=bn, cn=cn, eps_bn=eps_bn,
                                    eps_cn=eps_cn, gamma=gamma_c, beta=beta_c)

    out3 = _conv_affine_relu(x3, w_eff, b_eff, scale, shift,
                             tco=tco, thw=thw, vmem_limit=vmem_limit,
                             out_dtype=x.dtype)
    return out3.reshape(n, cout, h, w_sp)


# ----------------------------------- test -------------------------------------

if __name__ == "__main__":
    key = jax.random.PRNGKey(0)
    kx, kw, kb = jax.random.split(key, 3)

    # Shapes implied by the module's use as a pointwise "conv1d" over a point
    # set: x is B x C_in x N_points x 1 (NCHW), kernel_size = 1.
    N, C_IN, NPTS, C_OUT = 2, 4, 256, 32
    x = jax.random.normal(kx, (N, C_IN, NPTS, 1), dtype=jnp.float32)
    weight = jax.random.normal(kw, (C_OUT, C_IN, 1, 1), dtype=jnp.float32) * 0.5
    bias = jax.random.normal(kb, (C_OUT,), dtype=jnp.float32) * 0.1

    out = conv1d_forward(x, weight, bias, cn=False, bn=True, activation="post")
    out = jax.block_until_ready(out)

    # Pure-JAX reference: 1x1 conv -> training-mode BatchNorm2d(eps=1e-3) -> ReLU.
    w2 = weight[:, :, 0, 0]
    y = jnp.einsum("oc,nchw->nohw", w2, x,
                   precision=jax.lax.Precision.HIGHEST) + bias[None, :, None, None]
    m = jnp.mean(y, axis=(0, 2, 3), keepdims=True)
    v = jnp.mean((y - m) ** 2, axis=(0, 2, 3), keepdims=True)
    ref = jnp.maximum((y - m) * jax.lax.rsqrt(v + 1e-3), 0.0)

    assert out.shape == ref.shape and out.dtype == x.dtype
    assert float(jnp.max(jnp.abs(out - ref))) < 5e-4
    print("KERNEL_OK")
</pallas_src>

<mosaic_0001>
module attributes {stable_mosaic.version = 11 : i64} {
  func.func @_conv_stats_kernel(%arg0: i32, %arg1: i32, %arg2: i32, %arg3: memref<1x4x256xf32, #tpu.memory_space<vmem>>, %arg4: memref<32x4xf32, #tpu.memory_space<vmem>>, %arg5: memref<32x1xf32, #tpu.memory_space<vmem>>, %arg6: memref<32x1xf32, #tpu.memory_space<vmem>>, %arg7: memref<32x1xf32, #tpu.memory_space<vmem>>) attributes {dimension_semantics = [#tpu.dimension_semantics<parallel>, #tpu.dimension_semantics<arbitrary>, #tpu.dimension_semantics<arbitrary>], iteration_bounds = array<i64: 1, 2, 1>, scalar_prefetch = 0 : i64, scratch_operands = 0 : i64, tpu.core_type = #tpu.core_type<tc>, window_params = [{transform_indices = @transform_0, window_bounds = array<i64: 1, 4, 256>}, {transform_indices = @transform_1, window_bounds = array<i64: 32, 4>}, {transform_indices = @transform_2, window_bounds = array<i64: 32, 1>}, {transform_indices = @transform_3, window_bounds = array<i64: 32, 1>}, {transform_indices = @transform_4, window_bounds = array<i64: 32, 1>}]} {
    %c0_i32 = arith.constant 0 : i32
    %0 = arith.cmpi eq, %arg1, %c0_i32 : i32
    %c0_i32_0 = arith.constant 0 : i32
    %1 = arith.cmpi eq, %arg2, %c0_i32_0 : i32
    %2 = arith.andi %0, %1 : i1
    %3 = arith.extui %2 : i1 to i32
    %c0_i32_1 = arith.constant 0 : i32
    %4 = arith.cmpi ne, %3, %c0_i32_1 : i32
    scf.if %4 {
      %cst_18 = arith.constant 0.000000e+00 : f32
      %23 = vector.broadcast %cst_18 : f32 to vector<32x1xf32>
      %c0_19 = arith.constant 0 : index
      %c0_20 = arith.constant 0 : index
      %24 = vector.load %arg6[%c0_19, %c0_20] : memref<32x1xf32, #tpu.memory_space<vmem>>, vector<32x1xf32>
      tpu.vector_store %arg6[%c0_19, %c0_20], %23 {strides = array<i32>} : memref<32x1xf32, #tpu.memory_space<vmem>>, vector<32x1xf32>,
      %cst_21 = arith.constant 0.000000e+00 : f32
      %25 = vector.broadcast %cst_21 : f32 to vector<32x1xf32>
      %c0_22 = arith.constant 0 : index
      %c0_23 = arith.constant 0 : index
      %26 = vector.load %arg7[%c0_22, %c0_23] : memref<32x1xf32, #tpu.memory_space<vmem>>, vector<32x1xf32>
      tpu.vector_store %arg7[%c0_22, %c0_23], %25 {strides = array<i32>} : memref<32x1xf32, #tpu.memory_space<vmem>>, vector<32x1xf32>,
    } else {
    }
    %c0 = arith.constant 0 : index
    %c0_2 = arith.constant 0 : index
    %c0_3 = arith.constant 0 : index
    %5 = vector.load %arg3[%c0, %c0_2, %c0_3] : memref<1x4x256xf32, #tpu.memory_space<vmem>>, vector<1x4x256xf32>
    %6 = vector.shape_cast %5 : vector<1x4x256xf32> to vector<4x256xf32>
    %c0_4 = arith.constant 0 : index
    %c0_5 = arith.constant 0 : index
    %7 = vector.load %arg4[%c0_4, %c0_5] : memref<32x4xf32, #tpu.memory_space<vmem>>, vector<32x4xf32>
    %cst = arith.constant dense<0.000000e+00> : vector<32x256xf32>
    %8 = tpu.matmul %7, %6, %cst {dimension_numbers = #tpu.dot_dimension_numbers<[1], [0], [0], [1], [0, 0, 1, 1], [], []>} : vector<32x4xf32>, vector<4x256xf32>, vector<32x256xf32> -> vector<32x256xf32>
    %c0_6 = arith.constant 0 : index
    %c0_7 = arith.constant 0 : index
    %9 = vector.load %arg5[%c0_6, %c0_7] : memref<32x1xf32, #tpu.memory_space<vmem>>, vector<32x1xf32>
    %10 = vector.broadcast %9 : vector<32x1xf32> to vector<32x256xf32>
    %11 = arith.addf %8, %10 : vector<32x256xf32>
    %c0_8 = arith.constant 0 : index
    %c0_9 = arith.constant 0 : index
    %12 = vector.load %arg6[%c0_8, %c0_9] : memref<32x1xf32, #tpu.memory_space<vmem>>, vector<32x1xf32>
    %cst_10 = arith.constant dense<0.000000e+00> : vector<32xf32>
    %13 = vector.multi_reduction <add>, %11, %cst_10 [1] : vector<32x256xf32> to vector<32xf32>
    %14 = vector.shape_cast %13 : vector<32xf32> to vector<32x1xf32>
    %15 = arith.addf %12, %14 : vector<32x1xf32>
    %c0_11 = arith.constant 0 : index
    %c0_12 = arith.constant 0 : index
    %16 = vector.load %arg6[%c0_11, %c0_12] : memref<32x1xf32, #tpu.memory_space<vmem>>, vector<32x1xf32>
    tpu.vector_store %arg6[%c0_11, %c0_12], %15 {strides = array<i32>} : memref<32x1xf32, #tpu.memory_space<vmem>>, vector<32x1xf32>,
    %c0_13 = arith.constant 0 : index
    %c0_14 = arith.constant 0 : index
    %17 = vector.load %arg7[%c0_13, %c0_14] : memref<32x1xf32, #tpu.memory_space<vmem>>, vector<32x1xf32>
    %18 = arith.mulf %11, %11 : vector<32x256xf32>
    %cst_15 = arith.constant dense<0.000000e+00> : vector<32xf32>
    %19 = vector.multi_reduction <add>, %18, %cst_15 [1] : vector<32x256xf32> to vector<32xf32>
    %20 = vector.shape_cast %19 : vector<32xf32> to vector<32x1xf32>
    %21 = arith.addf %17, %20 : vector<32x1xf32>
    %c0_16 = arith.constant 0 : index
    %c0_17 = arith.constant 0 : index
    %22 = vector.load %arg7[%c0_16, %c0_17] : memref<32x1xf32, #tpu.memory_space<vmem>>, vector<32x1xf32>
    tpu.vector_store %arg7[%c0_16, %c0_17], %21 {strides = array<i32>} : memref<32x1xf32, #tpu.memory_space<vmem>>, vector<32x1xf32>,
    return
  }
  func.func @transform_0(%arg0: i32, %arg1: i32, %arg2: i32) -> (i32, i32, i32) {
    %c0_i32 = arith.constant 0 : i32
    %c0_i32_0 = arith.constant 0 : i32
    return %arg1, %c0_i32, %arg2 : i32, i32, i32
  }
  func.func @transform_1(%arg0: i32, %arg1: i32, %arg2: i32) -> (i32, i32) {
    %c0_i32 = arith.constant 0 : i32
    %c0_i32_0 = arith.constant 0 : i32
    return %arg0, %c0_i32 : i32, i32
  }
  func.func @transform_2(%arg0: i32, %arg1: i32, %arg2: i32) -> (i32, i32) {
    %c0_i32 = arith.constant 0 : i32
    %c0_i32_0 = arith.constant 0 : i32
    return %arg0, %c0_i32 : i32, i32
  }
  func.func @transform_3(%arg0: i32, %arg1: i32, %arg2: i32) -> (i32, i32) {
    %c0_i32 = arith.constant 0 : i32
    %c0_i32_0 = arith.constant 0 : i32
    return %arg0, %c0_i32 : i32, i32
  }
  func.func @transform_4(%arg0: i32, %arg1: i32, %arg2: i32) -> (i32, i32) {
    %c0_i32 = arith.constant 0 : i32
    %c0_i32_0 = arith.constant 0 : i32
    return %arg0, %c0_i32 : i32, i32
  }
}

</mosaic_0001>

<llo_original>
// kernel: tpu_custom_call.1
$region0: #{tpu_custom_call.1}
  #allocation0 [shape = 'u32[]', space=smem, size = 0x4, offset = 0x4, fixed_abs, tag = 'smem constant byte address 0x4 - core index']
  #allocation1 [shape = 'u32[144,128]{1,0:T(1,128)}', space=vmem, size = 0x12000, scoped, tag = 'internal scratch']
  %s0 = inlined_call_operand.vmem [shape: f32[2,4,256], index: 0, kind: input, shape index: {}]
  %s1 = inlined_call_operand.vmem [shape: f32[32,4], index: 1, kind: input, shape index: {}]
  %s2 = inlined_call_operand.vmem [shape: f32[32,1], index: 2, kind: input, shape index: {}]
  %s3 = inlined_call_operand.vmem [shape: f32[32,1], index: 3, kind: output, shape index: {0}]
  %s4 = inlined_call_operand.vmem [shape: f32[32,1], index: 4, kind: output, shape index: {1}]
  %5 = xla_tuple %s3, %s4
  %s6 = sld [smem:[#allocation0]]
  $region57: #{tpu_custom_call.1} parent=0
    _
  %s8 = ssub.s32 1, %s6
  %s9 = scalar_select 0, %s8, %s6
  loop: start=0, step=1, limit=4
  $region2: #{tpu_custom_call.1} parent=0 // loop_pre_header
    _
  $region3: #{tpu_custom_call.1} parent=0 // loop_header
    %s11 = sphi 0, %s15
    %p12 = scmp.ge.s32.totalorder %s11, 4
    %s18 = sphi 0, %s37
    %s19 = sphi 0, %s33
    %s20 = sphi 0, %s29
    %s21 = sphi 0, %s18
    %s22 = sphi 0, %s19
    %s23 = sphi 0, %s20
    %s24 = sphi 0, %s21
    %s25 = sphi 0, %s22
    %s26 = sphi 0, %s23
    %s42 = sphi 0, %s44
    %s45 = sphi 0, %s42
    %s46 = sphi 0, %s45
    %s62 = sphi 0, %s46
    %s68 = sphi 0, %s70
    %s71 = sphi 0, %s68
    %s72 = sphi 0, %s71
    %s88 = sphi 0, %s72
    %s94 = sphi 0, %s96
    %s97 = sphi 0, %s94
    %s98 = sphi 0, %s97
    %s114 = sphi 0, %s98
    %s120 = sphi 0, %s122
    %s123 = sphi 0, %s120
    %s124 = sphi 0, %s123
    %s140 = sphi 0, %s124
    %s146 = sphi 0, %s148
    %s149 = sphi 0, %s146
    %s150 = sphi 0, %s149
    %s166 = sphi 0, %s150
  $region4: #{tpu_custom_call.1} parent=0 // loop_header_branch
    %14 = sbr.rel (%p12) target = $region8
  $region5: #{tpu_custom_call.1} parent=0 // loop_body
    %s16 = ssub.s32 %s11, 1
    %s17 = ssub.s32 %s11, 2
    %s27 = sadd.s32 1, %s20
    %p28 = scmp.ge.s32.totalorder %s27, 1
    %s29 = scalar_select %p28, 0, %s27
    %s30 = sadd.s32 1, %s19
    %s31 = scalar_select %p28, %s30, %s19
    %p32 = scmp.ge.s32.totalorder %s31, 2
    %s33 = scalar_select %p32, 0, %s31
    %s34 = sadd.s32 1, %s18
    %s35 = scalar_select %p32, %s34, %s18
    %p36 = scmp.ge.s32.totalorder %s35, 1
    %s37 = scalar_select %p36, 0, %s35
    %s38 = ssub.s32 %s19, %s33
    %s39 = ssub.s32 %s20, %s29
    %s40 = sor.u32 %s38, %s39
    %p41 = scmp.eq.s32.totalorder %s40, 0
    %s43 = sadd.s32 %s42, 1
    %s44 = scalar_select %p41, %s42, %s43
    %p47 = pneg %p41
    %p48 = scmp.eq.s32.totalorder %s11, 1
    %p49 = por %p47, %p48
    %p50 = scmp.ne.s32.totalorder %s42, %s45
    %p51 = scmp.eq.s32.totalorder %s11, 0
    %p52 = por %p50, %p51
    %p53 = scmp.ne.s32.totalorder %s42, %s45
    %p54 = scmp.eq.s32.totalorder %s16, 1
    %p55 = por %p53, %p54
    %p56 = scmp.ne.s32.totalorder %s45, %s46
    %p57 = scmp.eq.s32.totalorder %s16, 0
    %p58 = por %p56, %p57
    %p59 = scmp.ne.s32.totalorder %s45, %s46
    %p60 = scmp.eq.s32.totalorder %s17, 1
    %p61 = por %p59, %p60
    %p63 = scmp.ne.s32.totalorder %s46, %s62
    %p64 = scmp.eq.s32.totalorder %s17, 0
    %p65 = por %p63, %p64
    %s66 = ssub.s32 %s18, %s37
    %p67 = scmp.eq.s32.totalorder %s66, 0
    %s69 = sadd.s32 %s68, 1
    %s70 = scalar_select %p67, %s68, %s69
    %p73 = pneg %p67
    %p74 = scmp.eq.s32.totalorder %s11, 1
    %p75 = por %p73, %p74
    %p76 = scmp.ne.s32.totalorder %s68, %s71
    %p77 = scmp.eq.s32.totalorder %s11, 0
    %p78 = por %p76, %p77
    %p79 = scmp.ne.s32.totalorder %s68, %s71
    %p80 = scmp.eq.s32.totalorder %s16, 1
    %p81 = por %p79, %p80
    %p82 = scmp.ne.s32.totalorder %s71, %s72
    %p83 = scmp.eq.s32.totalorder %s16, 0
    %p84 = por %p82, %p83
    %p85 = scmp.ne.s32.totalorder %s71, %s72
    %p86 = scmp.eq.s32.totalorder %s17, 1
    %p87 = por %p85, %p86
    %p89 = scmp.ne.s32.totalorder %s72, %s88
    %p90 = scmp.eq.s32.totalorder %s17, 0
    %p91 = por %p89, %p90
    %s92 = ssub.s32 %s18, %s37
    %p93 = scmp.eq.s32.totalorder %s92, 0
    %s95 = sadd.s32 %s94, 1
    %s96 = scalar_select %p93, %s94, %s95
    %p99 = pneg %p93
    %p100 = scmp.eq.s32.totalorder %s11, 1
    %p101 = por %p99, %p100
    %p102 = scmp.ne.s32.totalorder %s94, %s97
    %p103 = scmp.eq.s32.totalorder %s11, 0
    %p104 = por %p102, %p103
    %p105 = scmp.ne.s32.totalorder %s94, %s97
    %p106 = scmp.eq.s32.totalorder %s16, 1
    %p107 = por %p105, %p106
    %p108 = scmp.ne.s32.totalorder %s97, %s98
    %p109 = scmp.eq.s32.totalorder %s16, 0
    %p110 = por %p108, %p109
    %p111 = scmp.ne.s32.totalorder %s97, %s98
    %p112 = scmp.eq.s32.totalorder %s17, 1
    %p113 = por %p111, %p112
    %p115 = scmp.ne.s32.totalorder %s98, %s114
    %p116 = scmp.eq.s32.totalorder %s17, 0
    %p117 = por %p115, %p116
    %s118 = ssub.s32 %s18, %s37
    %p119 = scmp.eq.s32.totalorder %s118, 0
    %s121 = sadd.s32 %s120, 1
    %s122 = scalar_select %p119, %s120, %s121
    %p125 = pneg %p119
    %p126 = scmp.eq.s32.totalorder %s11, 1
    %p127 = por %p125, %p126
    %p128 = scmp.ne.s32.totalorder %s120, %s123
    %p129 = scmp.eq.s32.totalorder %s11, 0
    %p130 = por %p128, %p129
    %p131 = scmp.ne.s32.totalorder %s120, %s123
    %p132 = scmp.eq.s32.totalorder %s16, 1
    %p133 = por %p131, %p132
    %p134 = scmp.ne.s32.totalorder %s123, %s124
    %p135 = scmp.eq.s32.totalorder %s16, 0
    %p136 = por %p134, %p135
    %p137 = scmp.ne.s32.totalorder %s123, %s124
    %p138 = scmp.eq.s32.totalorder %s17, 1
    %p139 = por %p137, %p138
    %p141 = scmp.ne.s32.totalorder %s124, %s140
    %p142 = scmp.eq.s32.totalorder %s17, 0
    %p143 = por %p141, %p142
    %s144 = ssub.s32 %s18, %s37
    %p145 = scmp.eq.s32.totalorder %s144, 0
    %s147 = sadd.s32 %s146, 1
    %s148 = scalar_select %p145, %s146, %s147
    %p151 = pneg %p145
    %p152 = scmp.eq.s32.totalorder %s11, 1
    %p153 = por %p151, %p152
    %p154 = scmp.ne.s32.totalorder %s146, %s149
    %p155 = scmp.eq.s32.totalorder %s11, 0
    %p156 = por %p154, %p155
    %p157 = scmp.ne.s32.totalorder %s146, %s149
    %p158 = scmp.eq.s32.totalorder %s16, 1
    %p159 = por %p157, %p158
    %p160 = scmp.ne.s32.totalorder %s149, %s150
    %p161 = scmp.eq.s32.totalorder %s16, 0
    %p162 = por %p160, %p161
    %p163 = scmp.ne.s32.totalorder %s149, %s150
    %p164 = scmp.eq.s32.totalorder %s17, 1
    %p165 = por %p163, %p164
    %p167 = scmp.ne.s32.totalorder %s150, %s166
    %p168 = scmp.eq.s32.totalorder %s17, 0
    %p169 = por %p167, %p168
    %p170 = scmp.le.s32.totalorder 1, %s11
    %p171 = scmp.lt.s32.totalorder %s11, 3
    %p172 = pnand %p170, %p171
    %p173 = pneg %p172
    // Predicated region
    $region9: #{tpu_custom_call.1} parent=5 // pred_check
      _
    $region10: #{tpu_custom_call.1} parent=5 // pred_check_branch
      %175 = sbr.rel (%p172) target = $region12
    $region11: #{tpu_custom_call.1} parent=5 // pred_region
      %s176 = ssub.s32 %s11, 1
      // Predicated region
      $region13: #{tpu_custom_call.1} parent=11 // pred_check
        %p177 = pneg %p84
      $region14: #{tpu_custom_call.1} parent=11 // pred_check_branch
        %179 = sbr.rel (%p177) target = $region16
      $region15: #{tpu_custom_call.1} parent=11 // pred_region
        %s180 = smul.u32 4, %s21
        %p181 = scmp.lt.s32.totalorder %s180, 3
        %s182 = scalar_select %p181, %s180, 3
        %s183 = smul.addr %s182, 8
        %s184 = scalar_lea.vmem %s1, %s183
        %s185 = smul.u32 4, %s21
      $region16: #{tpu_custom_call.1} parent=11 // pred_fallthru
        _
      // Predicated region
      $region17: #{tpu_custom_call.1} parent=11 // pred_check
        %p186 = pneg %p110
      $region18: #{tpu_custom_call.1} parent=11 // pred_check_branch
        %188 = sbr.rel (%p186) target = $region20
      $region19: #{tpu_custom_call.1} parent=11 // pred_region
        %s189 = smul.u32 4, %s21
        %p190 = scmp.lt.s32.totalorder %s189, 3
        %s191 = scalar_select %p190, %s189, 3
        %s192 = smul.addr %s191, 8
        %s193 = scalar_lea.vmem %s2, %s192
        %s194 = smul.u32 4, %s21
      $region20: #{tpu_custom_call.1} parent=11 // pred_fallthru
        _
    $region12: #{tpu_custom_call.1} parent=5 // pred_fallthru
      _
    %p195 = scmp.lt.s32.totalorder %s11, 2
    // Predicated region
    $region21: #{tpu_custom_call.1} parent=5 // pred_check
      %p196 = pneg %p195
    $region22: #{tpu_custom_call.1} parent=5 // pred_check_branch
      %198 = sbr.rel (%p196) target = $region24
    $region23: #{tpu_custom_call.1} parent=5 // pred_region
      // Predicated region
      $region25: #{tpu_custom_call.1} parent=23 // pred_check
        %p199 = pneg %p52
      $region26: #{tpu_custom_call.1} parent=23 // pred_check_branch
        %201 = sbr.rel (%p199) target = $region28
      $region27: #{tpu_custom_call.1} parent=23 // pred_region
        %s202 = smul.u32 2, %s20
        %p203 = scmp.lt.s32.totalorder %s19, 1
        %s204 = scalar_select %p203, %s19, 1
        %p205 = scmp.lt.s32.totalorder %s202, 1
        %s206 = scalar_select %p205, %s202, 1
        %s207 = smul.addr %s204, 2
        %s208 = sadd.s32 %s206, %s207
        %s209 = smul.addr %s208, 4
        %s210 = scalar_lea.vmem %s0, %s209
        %s211 = smul.u32 2, %s20
      $region28: #{tpu_custom_call.1} parent=23 // pred_fallthru
        _
    $region24: #{tpu_custom_call.1} parent=5 // pred_fallthru
      _
    %p212 = scmp.le.s32.totalorder 1, %s11
    %p213 = scmp.lt.s32.totalorder %s11, 3
    %p214 = pnand %p212, %p213
    %p215 = pneg %p214
    // Predicated region
    $region29: #{tpu_custom_call.1} parent=5 // pred_check
      _
    $region30: #{tpu_custom_call.1} parent=5 // pred_check_branch
      %217 = sbr.rel (%p214) target = $region32
    $region31: #{tpu_custom_call.1} parent=5 // pred_region
      %s218 = ssub.s32 %s11, 1
      %s219 = smul.u32 2, %s23
      %p220 = scmp.lt.s32.totalorder %s22, 1
      %s221 = scalar_select %p220, %s22, 1
      %p222 = scmp.lt.s32.totalorder %s219, 1
      %s223 = scalar_select %p222, %s219, 1
      %s224 = smul.addr %s221, 2
      %s225 = sadd.s32 %s223, %s224
      %s226 = smul.addr %s225, 4
      %s227 = scalar_lea.vmem %s0, %s226
      %p228 = pneg %p58
      %p229 = pneg %p55
      %s230 = smul.u32 4, %s21
      %p231 = scmp.lt.s32.totalorder %s230, 3
      %s232 = scalar_select %p231, %s230, 3
      %s233 = smul.addr %s232, 8
      %s234 = scalar_lea.vmem %s1, %s233
      %p235 = pneg %p84
      %p236 = pneg %p81
      %s237 = smul.u32 4, %s21
      %p238 = scmp.lt.s32.totalorder %s237, 3
      %s239 = scalar_select %p238, %s237, 3
      %s240 = smul.addr %s239, 8
      %s241 = scalar_lea.vmem %s2, %s240
      %p242 = pneg %p110
      %p243 = pneg %p107
      %p244 = pneg %p136
      %p245 = pneg %p133
      %s246 = smul.u32 4, %s21
      %p247 = scmp.lt.s32.totalorder %s246, 3
      %s248 = scalar_select %p247, %s246, 3
      %s249 = smul.addr %s248, 8
      %s250 = scalar_lea.vmem %s3, %s249
      %p251 = pneg %p162
      %p252 = pneg %p159
      %s253 = smul.u32 4, %s21
      %p254 = scmp.lt.s32.totalorder %s253, 3
      %s255 = scalar_select %p254, %s253, 3
      %s256 = smul.addr %s255, 8
      %s257 = scalar_lea.vmem %s4, %s256
      %s258 = smul.u32 2, %s23
      %p259 = scmp.lt.s32.totalorder %s22, 1
      %s260 = scalar_select %p259, %s22, 1
      %p261 = scmp.lt.s32.totalorder %s258, 1
      %s262 = scalar_select %p261, %s258, 1
      %s263 = smul.addr %s260, 2
      %s264 = sadd.s32 %s262, %s263
      %s265 = smul.addr %s264, 4
      %s266 = scalar_lea.vmem %s0, %s265
      %s267 = smul.u32 2, %s23
      %s268 = smul.u32 4, %s21
      %p269 = scmp.lt.s32.totalorder %s268, 3
      %s270 = scalar_select %p269, %s268, 3
      %s271 = smul.addr %s270, 8
      %s272 = scalar_lea.vmem %s1, %s271
      %s273 = smul.u32 4, %s21
      %s274 = smul.u32 4, %s21
      %p275 = scmp.lt.s32.totalorder %s274, 3
      %s276 = scalar_select %p275, %s274, 3
      %s277 = smul.addr %s276, 8
      %s278 = scalar_lea.vmem %s2, %s277
      %s279 = smul.u32 4, %s21
      %s280 = smul.u32 4, %s21
      %p281 = scmp.lt.s32.totalorder %s280, 3
      %s282 = scalar_select %p281, %s280, 3
      %s283 = smul.addr %s282, 8
      %s284 = scalar_lea.vmem %s3, %s283
      %s285 = smul.u32 4, %s21
      %s286 = smul.u32 4, %s21
      %p287 = scmp.lt.s32.totalorder %s286, 3
      %s288 = scalar_select %p287, %s286, 3
      %s289 = smul.addr %s288, 8
      %s290 = scalar_lea.vmem %s4, %s289
      %s291 = smul.u32 4, %s21
      %p292 = scmp.eq.s32.totalorder %s22, 0
      %p293 = scmp.eq.s32.totalorder %s23, 0
      %p294 = pnand %p292, %p293
      %p295 = pneg %p294
      // Predicated region
      $region33: #{tpu_custom_call.1} parent=31 // pred_check
        _
      $region34: #{tpu_custom_call.1} parent=31 // pred_check_branch
        %297 = sbr.rel (%p294) target = $region36
      $region35: #{tpu_custom_call.1} parent=31 // pred_region
        %vm298 = vcmask 7168
        %299 = vst.msk [vmem:[%s284] sm:$0xff] %vm298, 0.0
        %300 = vst.msk [vmem:[%s284 + $0x8] sm:$0xff] %vm298, 0.0
        %301 = vst.msk [vmem:[%s284 + $0x10] sm:$0xff] %vm298, 0.0
        %302 = vst.msk [vmem:[%s284 + $0x18] sm:$0xff] %vm298, 0.0
        %303 = vst.msk [vmem:[%s290] sm:$0xff] %vm298, 0.0
        %304 = vst.msk [vmem:[%s290 + $0x8] sm:$0xff] %vm298, 0.0
        %305 = vst.msk [vmem:[%s290 + $0x10] sm:$0xff] %vm298, 0.0
        %306 = vst.msk [vmem:[%s290 + $0x18] sm:$0xff] %vm298, 0.0
      $region36: #{tpu_custom_call.1} parent=31 // pred_fallthru
        _
      %v307 = vld [vmem:[%s266] sm:$0xff]
      %v308 = vld [vmem:[%s272] sm:$0xff]
      %v309 = vld [vmem:[%s272 + $0x8] sm:$0xff]
      %v310 = vld [vmem:[%s272 + $0x10] sm:$0xff]
      %v311 = vld [vmem:[%s272 + $0x18] sm:$0xff]
      %v312 = vld [vmem:[%s278] sm:$0xff]
      %v313 = vld [vmem:[%s278 + $0x8] sm:$0xff]
      %v314 = vld [vmem:[%s278 + $0x10] sm:$0xff]
      %v315 = vld [vmem:[%s278 + $0x18] sm:$0xff]
      %317 = vset.pattern.permute.xlu0 0
      %318 = vperm.xlu0 %317, %v312
      %v319 = vpop.permute.xlu0 %318
      %322 = vset.pattern.permute.xlu0 0
      %323 = vperm.xlu0 %322, %v313
      %v324 = vpop.permute.xlu0 %323
      %327 = vset.pattern.permute.xlu0 0
      %328 = vperm.xlu0 %327, %v314
      %v329 = vpop.permute.xlu0 %328
      %332 = vset.pattern.permute.xlu0 0
      %333 = vperm.xlu0 %332, %v315
      %v334 = vpop.permute.xlu0 %333
      %v337 = vcombine.high %v307, %v307
      %vm338 = vcmask 31744
      %v340 = vsel %vm338, %v308, 0
      %v343 = vsel %vm338, %v309, 0
      %v346 = vsel %vm338, %v310, 0
      %v349 = vsel %vm338, %v311, 0
      %vm351 = vcmask 1043456
      %v352 = vsel %vm351, %v307, 0
      %v354 = vsel %vm351, %v337, 0
      %356 = vmatprep.subr.mxu0 %v354
      %357 = vmatpush1.msra.mxu0 %v352
      %358 = vmatprep.subr.mxu0 0.0
      %359 = vmatpush1.msra.mxu0 0.0
      %360 = vmatprep.subr.mxu0 0.0
      %361 = vmatpush1.msra.mxu0 0.0
      %362 = vmatprep.subr.mxu0 0.0
      %363 = vmatpush1.msra.mxu0 0.0
      %364 = vmatprep.subr.mxu0 0.0
      %365 = vmatpush1.msra.mxu0 0.0
      %366 = vmatprep.subr.mxu0 0.0
      %367 = vmatpush1.msra.mxu0 0.0
      %368 = vmatprep.subr.mxu0 0.0
      %369 = vmatpush1.msra.mxu0 0.0
      %370 = vmatprep.subr.mxu0 0.0
      %371 = vmatpush1.msra.mxu0 0.0
      %372 = vmatprep.subr.mxu0 0.0
      %373 = vmatpush1.msra.mxu0 0.0
      %374 = vmatprep.subr.mxu0 0.0
      %375 = vmatpush1.msra.mxu0 0.0
      %376 = vmatprep.subr.mxu0 0.0
      %377 = vmatpush1.msra.mxu0 0.0
      %378 = vmatprep.subr.mxu0 0.0
      %379 = vmatpush1.msra.mxu0 0.0
      %380 = vmatprep.subr.mxu0 0.0
      %381 = vmatpush1.msra.mxu0 0.0
      %382 = vmatprep.subr.mxu0 0.0
      %383 = vmatpush1.msra.mxu0 0.0
      %384 = vmatprep.subr.mxu0 0.0
      %385 = vmatpush1.msra.mxu0 0.0
      %386 = vmatprep.subr.mxu0 0.0
      %387 = vmatpush1.msra.mxu0 0.0
      %388 = vmatprep.subr.mxu0 0.0
      %389 = vmatpush1.msra.mxu0 0.0
      %390 = vmatprep.subr.mxu0 0.0
      %391 = vmatpush1.msra.mxu0 0.0
      %392 = vmatprep.subr.mxu0 0.0
      %393 = vmatpush1.msra.mxu0 0.0
      %394 = vmatprep.subr.mxu0 0.0
      %395 = vmatpush1.msra.mxu0 0.0
      %396 = vmatprep.subr.mxu0 0.0
      %397 = vmatpush1.msra.mxu0 0.0
      %398 = vmatprep.subr.mxu0 0.0
      %399 = vmatpush1.msra.mxu0 0.0
      %400 = vmatprep.subr.mxu0 0.0
      %401 = vmatpush1.msra.mxu0 0.0
      %402 = vmatprep.subr.mxu0 0.0
      %403 = vmatpush1.msra.mxu0 0.0
      %404 = vmatprep.subr.mxu0 0.0
      %405 = vmatpush1.msra.mxu0 0.0
      %406 = vmatprep.subr.mxu0 0.0
      %407 = vmatpush1.msra.mxu0 0.0
      %408 = vmatprep.subr.mxu0 0.0
      %409 = vmatpush1.msra.mxu0 0.0
      %410 = vmatprep.subr.mxu0 0.0
      %411 = vmatpush1.msra.mxu0 0.0
      %412 = vmatprep.subr.mxu0 0.0
      %413 = vmatpush1.msra.mxu0 0.0
      %414 = vmatprep.subr.mxu0 0.0
      %415 = vmatpush1.msra.mxu0 0.0
      %416 = vmatprep.subr.mxu0 0.0
      %417 = vmatpush1.msra.mxu0 0.0
      %418 = vmatprep.subr.mxu0 0.0
      %419 = vmatpush1.msra.mxu0 0.0
      %420 = vmatprep.mubr.f32.mxu0 0.0
      %421 = vmatmul.mubr.f32.gmra.mrb[0].mxu0 %v340
      %v422 = vpop.f32.mrb[0].mxu0
      %v423 = vadd.f32 %v319, %v422
      %v424 = vpop.f32.mrb[0].mxu0
      %v425 = vadd.f32 %v319, %v424
      %426 = vmatprep.mubr.f32.mxu0 0.0
      %427 = vmatmul.mubr.f32.gmra.mrb[0].mxu0 %v343
      %v428 = vpop.f32.mrb[0].mxu0
      %v429 = vadd.f32 %v324, %v428
      %v430 = vpop.f32.mrb[0].mxu0
      %v431 = vadd.f32 %v324, %v430
      %432 = vmatprep.mubr.f32.mxu0 0.0
      %433 = vmatmul.mubr.f32.gmra.mrb[0].mxu0 %v346
      %v434 = vpop.f32.mrb[0].mxu0
      %v435 = vadd.f32 %v329, %v434
      %v436 = vpop.f32.mrb[0].mxu0
      %v437 = vadd.f32 %v329, %v436
      %438 = vmatprep.mubr.f32.mxu0 0.0
      %439 = vmatmul.mubr.f32.gmra.mrb[0].mxu0 %v349
      %v440 = vpop.f32.mrb[0].mxu0
      %v441 = vadd.f32 %v334, %v440
      %v442 = vpop.f32.mrb[0].mxu0
      %v443 = vadd.f32 %v334, %v442
      %444 = vdwg.mxu0
      %v445 = vld [vmem:[%s284] sm:$0xff]
      %v446 = vld [vmem:[%s284 + $0x8] sm:$0xff]
      %v447 = vld [vmem:[%s284 + $0x10] sm:$0xff]
      %v448 = vld [vmem:[%s284 + $0x18] sm:$0xff]
      %v449 = vadd.f32 %v423, %v425
      %450 = vadd.xlane.f32.xlu0 %v449
      %v451 = vpop.xlane.xlu0 %450
      %v452 = vadd.f32 %v429, %v431
      %453 = vadd.xlane.f32.xlu0 %v452
      %v454 = vpop.xlane.xlu0 %453
      %v455 = vadd.f32 %v435, %v437
      %456 = vadd.xlane.f32.xlu0 %v455
      %v457 = vpop.xlane.xlu0 %456
      %v458 = vadd.f32 %v441, %v443
      %459 = vadd.xlane.f32.xlu0 %v458
      %v460 = vpop.xlane.xlu0 %459
      %v461 = vadd.f32 %v445, %v451
      %v462 = vadd.f32 %v446, %v454
      %v463 = vadd.f32 %v447, %v457
      %v464 = vadd.f32 %v448, %v460
      %vm465 = vcmask 7168
      %466 = vst.msk [vmem:[%s284] sm:$0xff] %vm465, %v461
      %467 = vst.msk [vmem:[%s284 + $0x8] sm:$0xff] %vm465, %v462
      %468 = vst.msk [vmem:[%s284 + $0x10] sm:$0xff] %vm465, %v463
      %469 = vst.msk [vmem:[%s284 + $0x18] sm:$0xff] %vm465, %v464
      %v470 = vld [vmem:[%s290] sm:$0xff]
      %v471 = vld [vmem:[%s290 + $0x8] sm:$0xff]
      %v472 = vld [vmem:[%s290 + $0x10] sm:$0xff]
      %v473 = vld [vmem:[%s290 + $0x18] sm:$0xff]
      %v474 = vmul.f32 %v423, %v423
      %v475 = vmul.f32 %v425, %v425
      %v476 = vmul.f32 %v429, %v429
      %v477 = vmul.f32 %v431, %v431
      %v478 = vmul.f32 %v435, %v435
      %v479 = vmul.f32 %v437, %v437
      %v480 = vmul.f32 %v441, %v441
      %v481 = vmul.f32 %v443, %v443
      %v482 = vadd.f32 %v474, %v475
      %483 = vadd.xlane.f32.xlu0 %v482
      %v484 = vpop.xlane.xlu0 %483
      %v485 = vadd.f32 %v476, %v477
      %486 = vadd.xlane.f32.xlu0 %v485
      %v487 = vpop.xlane.xlu0 %486
      %v488 = vadd.f32 %v478, %v479
      %489 = vadd.xlane.f32.xlu0 %v488
      %v490 = vpop.xlane.xlu0 %489
      %v491 = vadd.f32 %v480, %v481
      %492 = vadd.xlane.f32.xlu0 %v491
      %v493 = vpop.xlane.xlu0 %492
      %v494 = vadd.f32 %v470, %v484
      %v495 = vadd.f32 %v471, %v487
      %v496 = vadd.f32 %v472, %v490
      %v497 = vadd.f32 %v473, %v493
      %498 = vst.msk [vmem:[%s290] sm:$0xff] %vm465, %v494
      %499 = vst.msk [vmem:[%s290 + $0x8] sm:$0xff] %vm465, %v495
      %500 = vst.msk [vmem:[%s290 + $0x10] sm:$0xff] %vm465, %v496
      %501 = vst.msk [vmem:[%s290 + $0x18] sm:$0xff] %vm465, %v497
      %s502 = smul.u32 4, %s21
      %p503 = scmp.lt.s32.totalorder %s502, 3
      %s504 = scalar_select %p503, %s502, 3
      %s505 = smul.addr %s504, 8
      %s506 = scalar_lea.vmem %s3, %s505
      %s507 = smul.u32 4, %s21
      %p508 = scmp.lt.s32.totalorder %s507, 3
      %s509 = scalar_select %p508, %s507, 3
      %s510 = smul.addr %s509, 8
      %s511 = scalar_lea.vmem %s4, %s510
      // Predicated region
      $region37: #{tpu_custom_call.1} parent=31 // pred_check
        %p512 = pneg %p133
      $region38: #{tpu_custom_call.1} parent=31 // pred_check_branch
        %514 = sbr.rel (%p512) target = $region40
      $region39: #{tpu_custom_call.1} parent=31 // pred_region
        %s515 = smul.u32 4, %s21
      $region40: #{tpu_custom_call.1} parent=31 // pred_fallthru
        _
      // Predicated region
      $region41: #{tpu_custom_call.1} parent=31 // pred_check
        %p516 = pneg %p159
      $region42: #{tpu_custom_call.1} parent=31 // pred_check_branch
        %518 = sbr.rel (%p516) target = $region44
      $region43: #{tpu_custom_call.1} parent=31 // pred_region
        %s519 = smul.u32 4, %s21
      $region44: #{tpu_custom_call.1} parent=31 // pred_fallthru
        _
      // Predicated region
      $region45: #{tpu_custom_call.1} parent=31 // pred_check
        %p520 = pneg %p133
      $region46: #{tpu_custom_call.1} parent=31 // pred_check_branch
        %522 = sbr.rel (%p520) target = $region48
      $region47: #{tpu_custom_call.1} parent=31 // pred_region
        %s523 = smul.u32 4, %s21
        %p524 = scmp.lt.s32.totalorder %s523, 3
        %s525 = scalar_select %p524, %s523, 3
        %s526 = smul.addr %s525, 8
        %s527 = scalar_lea.vmem %s3, %s526
      $region48: #{tpu_custom_call.1} parent=31 // pred_fallthru
        _
      // Predicated region
      $region49: #{tpu_custom_call.1} parent=31 // pred_check
        %p528 = pneg %p159
      $region50: #{tpu_custom_call.1} parent=31 // pred_check_branch
        %530 = sbr.rel (%p528) target = $region52
      $region51: #{tpu_custom_call.1} parent=31 // pred_region
        %s531 = smul.u32 4, %s21
        %p532 = scmp.lt.s32.totalorder %s531, 3
        %s533 = scalar_select %p532, %s531, 3
        %s534 = smul.addr %s533, 8
        %s535 = scalar_lea.vmem %s4, %s534
      $region52: #{tpu_custom_call.1} parent=31 // pred_fallthru
        _
    $region32: #{tpu_custom_call.1} parent=5 // pred_fallthru
      _
    %p536 = scmp.le.s32.totalorder 2, %s11
    // Predicated region
    $region53: #{tpu_custom_call.1} parent=5 // pred_check
      %p537 = pneg %p536
    $region54: #{tpu_custom_call.1} parent=5 // pred_check_branch
      %539 = sbr.rel (%p537) target = $region56
    $region55: #{tpu_custom_call.1} parent=5 // pred_region
      %s540 = ssub.s32 %s11, 2
    $region56: #{tpu_custom_call.1} parent=5 // pred_fallthru
      _
  $region6: #{tpu_custom_call.1} parent=0 // loop_footer
    %s15 = sadd.s32 1, %s11
  $region7: #{tpu_custom_call.1} parent=0 // loop_footer_branch
    %10 = sbr.rel target = $region3
  $region8: #{tpu_custom_call.1} parent=0 // loop_exit
    _

</llo_original>
